<compile_context>
chip_gen: v5e
topology: v5e:2x2
jax: 0.10.0
libtpu: 0.0.40
codegen_flags: <defaults>
</compile_context>

<pallas_src>
import jax
import jax.numpy as jnp
from jax.experimental import pallas as pl
from jax.experimental.pallas import tpu as pltpu


def _cdiv(a, b):
    return (a + b - 1) // b


def _round_up(a, b):
    return _cdiv(a, b) * b


def _make_kernel(mode: str, alpha: float, tm: int, n_rows: int, needs_mask: bool):
    """mode / alpha / tile geometry are decided statically (like the torch __init__ flags)."""

    def kernel(out_ref, lab_ref, loss_ref):
        o = out_ref[...].astype(jnp.float32)
        l = lab_ref[...].astype(jnp.float32)

        # Shared, numerically stable pieces; e_o / e_l are reused for both the
        # log-sum-exp and the softmax (no re-exponentiation of log_p / log_q).
        o_s = o - jnp.max(o, axis=-1, keepdims=True)
        e_o = jnp.exp(o_s)
        s_o = jnp.sum(e_o, axis=-1, keepdims=True)          # (tm, 1)

        l_s = l - jnp.max(l, axis=-1, keepdims=True)
        e_l = jnp.exp(l_s)
        s_l = jnp.sum(e_l, axis=-1, keepdims=True)          # (tm, 1)

        if mode == "kl":                                    # |alpha - 1| < 1e-5
            p = e_o * pl.reciprocal(s_o)                    # softmax(out)
            log_p = o_s - jnp.log(s_o)                      # log_softmax(out)
            log_q = l_s - jnp.log(s_l)                      # log_softmax(labels)
            val = p * (log_p - log_q)
        elif mode == "ce":                                  # |alpha| < 1e-5
            log_p = o_s - jnp.log(s_o)                      # log_softmax(out)
            q = e_l * pl.reciprocal(s_l)                    # softmax(labels)
            val = -log_p * q
        else:                                               # general alpha-divergence
            a = alpha
            ac = 1.0 - alpha
            p = e_o * pl.reciprocal(s_o)
            q = e_l * pl.reciprocal(s_l)
            # p**a * q**(1-a) = exp(a*o_s + ac*l_s) * s_o**(-a) * s_l**(-ac)
            row_scale = jnp.exp(-(a * jnp.log(s_o) + ac * jnp.log(s_l)))  # (tm, 1)
            cross = jnp.exp(a * o_s + ac * l_s) * row_scale
            val = (a * p + ac * q - cross) * (1.0 / (a * ac))

        # Lane (class) reduce, then mask padded rows (only present in the last tile).
        row_sum = jnp.sum(val, axis=-1, keepdims=True)      # (tm, 1)
        if needs_mask:
            row_ids = pl.program_id(0) * tm + jax.lax.broadcasted_iota(
                jnp.int32, (tm, 1), 0
            )
            row_sum = jnp.where(row_ids < n_rows, row_sum, 0.0)
        partial = jnp.sum(row_sum)                          # scalar per tile

        # Lane-dense (8,128) output block per tile: one-hot the scalar so the wrapper
        # can finish with a single jnp.sum over the partials array.
        r = jax.lax.broadcasted_iota(jnp.int32, (8, 128), 0)
        c = jax.lax.broadcasted_iota(jnp.int32, (8, 128), 1)
        loss_ref[...] = jnp.where((r == 0) & (c == 0), partial, 0.0)

    return kernel


def alpha_divergence_top_one(out, labels, alpha: float = 0.0):
    """Pallas equivalent of AlphaDivergenceTopOneCriterion(alpha)(out, labels)."""
    threshold = 1e-5
    if abs(alpha - 1.0) < threshold:
        mode = "kl"
    elif abs(alpha) < threshold:
        mode = "ce"
    else:
        mode = "general"

    N, C = out.shape
    assert labels.shape == (N, C)

    # Row tile: as large as a conservative VMEM budget allows (2 inputs x 2 pipeline
    # buffers x tm x C_pad x 4 B), capped at 1024 rows; works on v5e/v6e/v7x.
    c_pad = _round_up(C, 128)                      # lane padding of the VMEM tile
    budget_bytes = 20 * 1024 * 1024                # for the double-buffered f32 inputs
    tm = budget_bytes // (16 * c_pad)
    tm = max(8, min(1024, (tm // 8) * 8))
    tm = min(tm, _round_up(N, 8))

    num_tiles = _cdiv(N, tm)
    n_pad = num_tiles * tm
    needs_mask = n_pad != N
    if needs_mask:
        pad = ((0, n_pad - N), (0, 0))
        out = jnp.pad(out, pad)
        labels = jnp.pad(labels, pad)

    kernel = _make_kernel(mode, float(alpha), tm, N, needs_mask)

    partials = pl.pallas_call(
        kernel,
        out_shape=jax.ShapeDtypeStruct((num_tiles * 8, 128), jnp.float32),
        grid=(num_tiles,),
        in_specs=[
            pl.BlockSpec((tm, C), lambda i: (i, 0)),
            pl.BlockSpec((tm, C), lambda i: (i, 0)),
        ],
        out_specs=pl.BlockSpec((8, 128), lambda i: (i, 0)),
        compiler_params=pltpu.CompilerParams(
            dimension_semantics=("parallel",),      # independent per-tile outputs
            vmem_limit_bytes=32 * 1024 * 1024,
        ),
    )(out, labels)

    return jnp.sum(partials)


def _reference(out, labels, alpha):
    """Pure-JAX reference mirroring the torch forward, for correctness check."""
    threshold = 1e-5
    log_p = jax.nn.log_softmax(out, axis=1)
    p = jax.nn.softmax(out, axis=1)
    log_q = jax.nn.log_softmax(labels, axis=1)
    q = jax.nn.softmax(labels, axis=1)
    if abs(alpha - 1.0) < threshold:
        return jnp.sum(jnp.sum(p * (log_p - log_q), axis=1))
    elif abs(alpha) < threshold:
        return jnp.sum(-jnp.sum(log_p * q, axis=1))
    else:
        ac = 1.0 - alpha
        val = alpha * p + ac * q - jnp.power(p, alpha) * jnp.power(q, ac)
        val = val / alpha / ac
        return jnp.sum(jnp.sum(val, axis=1))


if __name__ == "__main__":
    key = jax.random.PRNGKey(0)
    ok = True

    # (N, C) test cases: aligned small case + an unaligned case that exercises
    # the padding / row-masking path.
    for (N, C) in ((8, 32), (13, 160)):
        k1, k2, key = jax.random.split(key, 3)
        out = jax.random.normal(k1, (N, C), dtype=jnp.float32)
        labels = jax.random.normal(k2, (N, C), dtype=jnp.float32)

        for alpha in (0.0, 1.0, 0.5):  # cross-entropy / KL / general branches
            got = jax.block_until_ready(
                alpha_divergence_top_one(out, labels, alpha=alpha)
            )
            want = jax.block_until_ready(_reference(out, labels, alpha))
            if not jnp.allclose(got, want, rtol=1e-5, atol=1e-5):
                ok = False
                print(f"MISMATCH N={N} C={C} alpha={alpha}: got {got}, want {want}")

    if ok:
        print("KERNEL_OK")
</pallas_src>

<mosaic_0001>
module attributes {stable_mosaic.version = 11 : i64} {
  func.func @kernel(%arg0: i32, %arg1: memref<8x32xf32, #tpu.memory_space<vmem>>, %arg2: memref<8x32xf32, #tpu.memory_space<vmem>>, %arg3: memref<8x128xf32, #tpu.memory_space<vmem>>) attributes {dimension_semantics = [#tpu.dimension_semantics<parallel>], iteration_bounds = array<i64: 1>, scalar_prefetch = 0 : i64, scratch_operands = 0 : i64, tpu.core_type = #tpu.core_type<tc>, window_params = [{transform_indices = @transform_0, window_bounds = array<i64: 8, 32>}, {transform_indices = @transform_1, window_bounds = array<i64: 8, 32>}, {transform_indices = @transform_2, window_bounds = array<i64: 8, 128>}]} {
    %c0 = arith.constant 0 : index
    %c0_0 = arith.constant 0 : index
    %0 = vector.load %arg1[%c0, %c0_0] : memref<8x32xf32, #tpu.memory_space<vmem>>, vector<8x32xf32>
    %c0_1 = arith.constant 0 : index
    %c0_2 = arith.constant 0 : index
    %1 = vector.load %arg2[%c0_1, %c0_2] : memref<8x32xf32, #tpu.memory_space<vmem>>, vector<8x32xf32>
    %cst = arith.constant dense<0xFF800000> : vector<8xf32>
    %2 = vector.multi_reduction <maximumf>, %0, %cst [1] : vector<8x32xf32> to vector<8xf32>
    %3 = vector.shape_cast %2 : vector<8xf32> to vector<8x1xf32>
    %4 = vector.broadcast %3 : vector<8x1xf32> to vector<8x32xf32>
    %5 = arith.subf %0, %4 : vector<8x32xf32>
    %6 = math.exp %5 : vector<8x32xf32>
    %cst_3 = arith.constant dense<0.000000e+00> : vector<8xf32>
    %7 = vector.multi_reduction <add>, %6, %cst_3 [1] : vector<8x32xf32> to vector<8xf32>
    %8 = vector.shape_cast %7 : vector<8xf32> to vector<8x1xf32>
    %cst_4 = arith.constant dense<0xFF800000> : vector<8xf32>
    %9 = vector.multi_reduction <maximumf>, %1, %cst_4 [1] : vector<8x32xf32> to vector<8xf32>
    %10 = vector.shape_cast %9 : vector<8xf32> to vector<8x1xf32>
    %11 = vector.broadcast %10 : vector<8x1xf32> to vector<8x32xf32>
    %12 = arith.subf %1, %11 : vector<8x32xf32>
    %13 = math.exp %12 : vector<8x32xf32>
    %cst_5 = arith.constant dense<0.000000e+00> : vector<8xf32>
    %14 = vector.multi_reduction <add>, %13, %cst_5 [1] : vector<8x32xf32> to vector<8xf32>
    %15 = vector.shape_cast %14 : vector<8xf32> to vector<8x1xf32>
    %16 = math.log %8 : vector<8x1xf32>
    %17 = vector.broadcast %16 : vector<8x1xf32> to vector<8x32xf32>
    %18 = arith.subf %5, %17 : vector<8x32xf32>
    %19 = tpu.reciprocal %15 : vector<8x1xf32> -> vector<8x1xf32>
    %20 = vector.broadcast %19 : vector<8x1xf32> to vector<8x32xf32>
    %21 = arith.mulf %13, %20 : vector<8x32xf32>
    %cst_6 = arith.constant 0.000000e+00 : f32
    %22 = vector.broadcast %cst_6 : f32 to vector<8x32xf32>
    %23 = arith.subf %22, %18 : vector<8x32xf32>
    %24 = arith.mulf %23, %21 : vector<8x32xf32>
    %cst_7 = arith.constant dense<0.000000e+00> : vector<8xf32>
    %25 = vector.multi_reduction <add>, %24, %cst_7 [1] : vector<8x32xf32> to vector<8xf32>
    %26 = vector.shape_cast %25 : vector<8xf32> to vector<8x1xf32>
    %27 = vector.shape_cast %26 : vector<8x1xf32> to vector<1x8x1xf32>
    %cst_8 = arith.constant dense<0.000000e+00> : vector<1xf32>
    %28 = vector.multi_reduction <add>, %27, %cst_8 [1, 2] : vector<1x8x1xf32> to vector<1xf32>
    %29 = vector.shape_cast %28 : vector<1xf32> to vector<1x1x1xf32>
    %30 = vector.extract %29[0, 0, 0] : f32 from vector<1x1x1xf32>
    %31 = tpu.iota {dimensions = array<i32: 0>} : vector<8x128xi32>
    %32 = tpu.iota {dimensions = array<i32: 1>} : vector<8x128xi32>
    %c0_i32 = arith.constant 0 : i32
    %33 = vector.broadcast %c0_i32 : i32 to vector<8x128xi32>
    %34 = arith.cmpi eq, %31, %33 : vector<8x128xi32>
    %c0_i32_9 = arith.constant 0 : i32
    %35 = vector.broadcast %c0_i32_9 : i32 to vector<8x128xi32>
    %36 = arith.cmpi eq, %32, %35 : vector<8x128xi32>
    %37 = arith.andi %34, %36 : vector<8x128xi1>
    %cst_10 = arith.constant 0.000000e+00 : f32
    %38 = vector.broadcast %30 : f32 to vector<8x128xf32>
    %39 = vector.broadcast %cst_10 : f32 to vector<8x128xf32>
    %40 = arith.select %37, %38, %39 : vector<8x128xi1>, vector<8x128xf32>
    %c0_11 = arith.constant 0 : index
    %c0_12 = arith.constant 0 : index
    %41 = vector.load %arg3[%c0_11, %c0_12] : memref<8x128xf32, #tpu.memory_space<vmem>>, vector<8x128xf32>
    tpu.vector_store %arg3[%c0_11, %c0_12], %40 {strides = array<i32>} : memref<8x128xf32, #tpu.memory_space<vmem>>, vector<8x128xf32>,
    return
  }
  func.func @transform_0(%arg0: i32) -> (i32, i32) {
    %c0_i32 = arith.constant 0 : i32
    %c0_i32_0 = arith.constant 0 : i32
    return %arg0, %c0_i32 : i32, i32
  }
  func.func @transform_1(%arg0: i32) -> (i32, i32) {
    %c0_i32 = arith.constant 0 : i32
    %c0_i32_0 = arith.constant 0 : i32
    return %arg0, %c0_i32 : i32, i32
  }
  func.func @transform_2(%arg0: i32) -> (i32, i32) {
    %c0_i32 = arith.constant 0 : i32
    %c0_i32_0 = arith.constant 0 : i32
    return %arg0, %c0_i32 : i32, i32
  }
}

</mosaic_0001>

<llo_original>
// kernel: tpu_custom_call.1
$region0: #{tpu_custom_call.1}
  #allocation0 [shape = 'u32[]', space=smem, size = 0x4, offset = 0x4, fixed_abs, tag = 'smem constant byte address 0x4 - core index']
  #allocation1 [shape = 'u32[72,128]{1,0:T(1,128)}', space=vmem, size = 0x9000, scoped, tag = 'internal scratch']
  %s0 = inlined_call_operand.hbm [shape: f32[8,32], index: 0, kind: input, shape index: {}]
  %s1 = inlined_call_operand.hbm [shape: f32[8,32], index: 1, kind: input, shape index: {}]
  %s2 = inlined_call_operand.hbm [shape: f32[8,128], index: 2, kind: output, shape index: {}]
  %s3 = sld [smem:[#allocation0]]
  $region26: #{tpu_custom_call.1} parent=0
    _
  %s5 = ssub.s32 1, %s3
  %s6 = scalar_select 0, %s5, %s3
  $region1: #{tpu_custom_call.1} parent=0
    #allocation2 [shape = 'u8[4096]{0}', space=vmem, size = 0x1000, scoped, tag = 'input window, operand 0, single buffered']
    #allocation3 [shape = 's32[1]{0}', space=sflag, size = 0x4, scoped, tag = 'scoped memory for tpu_custom_call.1']
    #allocation4 [shape = 's32[1]{0}', space=sflag, size = 0x4, scoped, tag = 'scoped memory for tpu_custom_call.1']
    #allocation5 [shape = 'u8[4096]{0}', space=vmem, size = 0x1000, scoped, tag = 'input window, operand 1, single buffered']
    #allocation6 [shape = 's32[1]{0}', space=sflag, size = 0x4, scoped, tag = 'scoped memory for tpu_custom_call.1']
    #allocation7 [shape = 'u8[4096]{0}', space=vmem, size = 0x1000, scoped, tag = 'output window, operand 0, single buffered']
    %7 = vsyncpa [#allocation3], 0
    %8 = vsyncpa [#allocation6], 0
    %9 = vsyncpa [#allocation4], 0
    // Predicated region
    $region2: #{tpu_custom_call.1} parent=1 // pred_check
      _
    $region3: #{tpu_custom_call.1} parent=1 // pred_check_branch
      %11 = sbr.rel (0) target = $region5
    $region4: #{tpu_custom_call.1} parent=1 // pred_region
      %13 = vsyncadd [#allocation3], 0
      %s15 = sshll.u32 %s0, 4
      %s16 = int_to_ptr.hbm [resolvable:$true] %s15
      %s17 = sshll.u32 [#allocation2], 4
      %s18 = int_to_ptr.vmem [resolvable:$true] %s17
      %20 = dma.hbm_to_vmem [thread:$0]  %s16, 128, %s18, [#allocation3]
    $region5: #{tpu_custom_call.1} parent=1 // pred_fallthru
      _
    // Predicated region
    $region6: #{tpu_custom_call.1} parent=1 // pred_check
      _
    $region7: #{tpu_custom_call.1} parent=1 // pred_check_branch
      %22 = sbr.rel (0) target = $region9
    $region8: #{tpu_custom_call.1} parent=1 // pred_region
      %24 = vsyncadd [#allocation6], 0
      %s26 = sshll.u32 %s1, 4
      %s27 = int_to_ptr.hbm [resolvable:$true] %s26
      %s28 = sshll.u32 [#allocation5], 4
      %s29 = int_to_ptr.vmem [resolvable:$true] %s28
      %31 = dma.hbm_to_vmem [thread:$0]  %s27, 128, %s29, [#allocation6]
    $region9: #{tpu_custom_call.1} parent=1 // pred_fallthru
      _
    // Predicated region
    $region10: #{tpu_custom_call.1} parent=1 // pred_check
      _
    $region11: #{tpu_custom_call.1} parent=1 // pred_check_branch
      %33 = sbr.rel (0) target = $region13
    $region12: #{tpu_custom_call.1} parent=1 // pred_region
      %35 = dma.done [#allocation3], 128
    $region13: #{tpu_custom_call.1} parent=1 // pred_fallthru
      _
    // Predicated region
    $region14: #{tpu_custom_call.1} parent=1 // pred_check
      _
    $region15: #{tpu_custom_call.1} parent=1 // pred_check_branch
      %37 = sbr.rel (0) target = $region17
    $region16: #{tpu_custom_call.1} parent=1 // pred_region
      %39 = dma.done [#allocation6], 128
    $region17: #{tpu_custom_call.1} parent=1 // pred_fallthru
      _
    %v40 = vld [vmem:[#allocation2] sm:$0xff]
    %v41 = vld [vmem:[#allocation5] sm:$0xff]
    %vm42 = vcmask 261120
    %v43 = vsel %vm42, %v40, -inf
    %44 = vmax.xlane.f32.xlu0 %v43
    %v45 = vpop.xlane.xlu0 %44
    %v46 = vsub.f32 %v40, %v45
    %v47 = vmul.f32 %v46, 1.442695
    %v48 = vpow.pop %v47
    %v49 = vsel %vm42, %v48, 0.0
    %50 = vadd.xlane.f32.xlu0 %v49
    %v51 = vpop.xlane.xlu0 %50
    %v52 = vsel %vm42, %v41, -inf
    %53 = vmax.xlane.f32.xlu0 %v52
    %v54 = vpop.xlane.xlu0 %53
    %v55 = vsub.f32 %v41, %v54
    %v56 = vmul.f32 %v55, 1.442695
    %v57 = vpow.pop %v56
    %v58 = vsel %vm42, %v57, 0.0
    %59 = vadd.xlane.f32.xlu0 %v58
    %v60 = vpop.xlane.xlu0 %59
    %v61 = vlog2.pop %v51
    %v62 = vmul.f32 %v61, 0.6931472
    %v63 = vsub.f32 %v46, %v62
    %v64 = vrcp.pop %v60
    %v65 = vmul.f32 %v60, %v64
    %v66 = vsub.f32 1.0, %v65
    %v67 = vmul.f32 %v64, %v66
    %v68 = vadd.f32 %v64, %v67
    %vm69 = vweird.f32 %v60
    %vm70 = vweird.f32 %v64
    %vm71 = vmor %vm69, %vm70
    %v72 = vsel %vm71, %v64, %v68
    %v73 = vand.u32 2147483647, %v60
    %vm74 = vcmp.eq.f32.partialorder %v73, 8.507059e+37
    %v75 = vand.u32 %v60, 2147483648
    %v76 = vor.u32 1.1754944e-38, %v75
    %v77 = vsel %vm74, %v76, %v72
    %v78 = vmul.f32 %v57, %v77
    %v79 = vsub.f32 0.0, %v63
    %v80 = vmul.f32 %v79, %v78
    %v81 = vsel %vm42, %v80, 0.0
    %82 = vadd.xlane.f32.xlu0 %v81
    %v83 = vpop.xlane.xlu0 %82
    %vm84 = vcmask 7168
    %v85 = vsel %vm84, %v83, 0.0
    %86 = vadd.xlane.f32.xlu0 %v85
    %v87 = vpop.xlane.xlu0 %86
    %v88 = vrot.slane %v87, 4
    %v89 = vadd.f32 %v87, %v88
    %v90 = vrot.slane %v89, 2
    %v91 = vadd.f32 %v89, %v90
    %v92 = vrot.slane %v91, 1
    %v93 = vadd.f32 %v91, %v92
    %s94 = vtos %v93
    %v95 = vlaneseq
    %v96 = vshrl.u32 %v95, 7
    %v97 = vlaneseq
    %v98 = vand.u32 %v97, 127
    %vm99 = vcmp.eq.s32.totalorder %v96, 0
    %vm100 = vcmp.eq.s32.totalorder %v98, 0
    %vm101 = vmand %vm99, %vm100
    %v102 = vstv %s94
    %v103 = vsel %vm101, %v102, 0.0
    %104 = vst [vmem:[#allocation7] sm:$0xff] %v103
    // Predicated region
    $region18: #{tpu_custom_call.1} parent=1 // pred_check
      _
    $region19: #{tpu_custom_call.1} parent=1 // pred_check_branch
      %106 = sbr.rel (0) target = $region21
    $region20: #{tpu_custom_call.1} parent=1 // pred_region
      %108 = vsyncadd [#allocation4], 0
      %s110 = sshll.u32 [#allocation7], 4
      %s111 = int_to_ptr.vmem [resolvable:$true] %s110
      %s112 = sshll.u32 %s2, 4
      %s113 = int_to_ptr.hbm [resolvable:$true] %s112
      %115 = dma.vmem_to_hbm [thread:$0]  %s111, 128, %s113, [#allocation4]
    $region21: #{tpu_custom_call.1} parent=1 // pred_fallthru
      _
    // Predicated region
    $region22: #{tpu_custom_call.1} parent=1 // pred_check
      _
    $region23: #{tpu_custom_call.1} parent=1 // pred_check_branch
      %117 = sbr.rel (0) target = $region25
    $region24: #{tpu_custom_call.1} parent=1 // pred_region
      %119 = dma.done [#allocation4], 128
    $region25: #{tpu_custom_call.1} parent=1 // pred_fallthru
      _
    %120 = vsyncpa [#allocation3], 1
    %121 = vsyncpa [#allocation6], 1
    %122 = vsyncpa [#allocation4], 1

</llo_original>
